<compile_context>
chip_gen: v5e
topology: v5e:2x2
jax: 0.10.0
libtpu: 0.0.40
codegen_flags: <defaults>
</compile_context>

<pallas_src>
from functools import partial

import jax
import jax.numpy as jnp
from jax.experimental import pallas as pl
from jax.experimental.pallas import tpu as pltpu


def _unet_block_kernel(H, W, Lp_pad, ext, starts,
                       x_ref, w1_ref, w2_ref, f1_ref, f2_ref, m_ref, eps_ref,
                       o_ref, xs1_ref, xs2_ref, a1e_ref):
    """Fused (conv3x3 -> FRN -> ReLU) x2 for one batch element.

    x_ref   : (1, Cin, Lext)  bf16  zero-extended padded-flat input (VMEM)
    w1_ref  : (Cout, 9*Cin)   bf16  layer-1 weights, K = tap-major (VMEM)
    w2_ref  : (Cout, 9*Cout)  bf16  layer-2 weights (VMEM)
    f1_ref  : (3, Cout, 1)    f32   layer-1 (gamma, beta, tau) (VMEM)
    f2_ref  : (3, Cout, 1)    f32   layer-2 (gamma, beta, tau) (VMEM)
    m_ref   : (1, Lp_pad)     f32   interior mask (zero in lane pad) (VMEM)
    eps_ref : (2,)            f32   (eps1, eps2) (SMEM)
    o_ref   : (1, Cout, Lp_pad) f32 output, padded-flat coords (VMEM)
    xs1_ref : (9*Cin, Lp_pad) bf16  stacked-K operand scratch, layer 1
    xs2_ref : (9*Cout, Lp_pad) bf16 stacked-K operand scratch, layer 2
    a1e_ref : (Cout, Lext)    bf16  zero-extended staging of layer-1 act.
    """
    cin = x_ref.shape[1]
    cout = o_ref.shape[1]
    lext = a1e_ref.shape[1]
    inv_hw = 1.0 / float(H * W)
    mask = m_ref[...]                                   # (1, Lp_pad) f32

    def frn_relu(acc, f_ref, eps):
        # acc: (Cout, Lp_pad) f32.  Mask before nu2 so border/lane-pad
        # garbage never enters the statistics; mask again after the TLU so
        # beta/tau cannot leak nonzero values into layer-2's implicit zero
        # padding (load-bearing).
        y = acc * mask
        nu2 = jnp.sum(y * y, axis=1, keepdims=True) * inv_hw      # (Cout, 1)
        xn = y * jax.lax.rsqrt(nu2 + jnp.abs(eps))
        z = jnp.maximum(f_ref[0] * xn + f_ref[1], f_ref[2])       # FRN + TLU
        return jnp.maximum(z, 0.0) * mask                         # ReLU

    # ---------------- layer 1: conv3x3 -> FRN -> ReLU ----------------
    xe = x_ref[0]                                       # (Cin, Lext) bf16
    for t, s in enumerate(starts):                      # 9 shifted copies
        xs1_ref[t * cin:(t + 1) * cin, :] = xe[:, s:s + Lp_pad]
    acc1 = jnp.dot(w1_ref[...], xs1_ref[...],           # ONE matmul, K=9*Cin
                   preferred_element_type=jnp.float32)  # (Cout, Lp_pad) f32
    a1 = frn_relu(acc1, f1_ref, eps_ref[0])

    # Stage a1 with zero wings: this IS layer-2's "same" padding.  Only the
    # two 128-lane wings need zeroing (the interior is fully overwritten and
    # already mask-zeroed at the frame border / lane pad).
    a1e_ref[:, :ext] = jnp.zeros((cout, ext), a1e_ref.dtype)
    a1e_ref[:, ext + Lp_pad:] = jnp.zeros((cout, lext - ext - Lp_pad),
                                          a1e_ref.dtype)
    a1e_ref[:, ext:ext + Lp_pad] = a1.astype(a1e_ref.dtype)   # aligned store

    # ---------------- layer 2: conv3x3 -> FRN -> ReLU ----------------
    a1e = a1e_ref[...]                                  # (Cout, Lext) bf16
    for t, s in enumerate(starts):
        xs2_ref[t * cout:(t + 1) * cout, :] = a1e[:, s:s + Lp_pad]
    acc2 = jnp.dot(w2_ref[...], xs2_ref[...],           # ONE matmul, K=9*Cout
                   preferred_element_type=jnp.float32)
    o_ref[0] = frn_relu(acc2, f2_ref, eps_ref[1]).astype(o_ref.dtype)


@jax.jit
def unet_conv_block(x_nchw, params):
    """UNetConvBlock forward. Input/output in PyTorch NCHW layout."""
    N, Cin, H, W = x_nchw.shape
    Cout = params["w1"].shape[0]
    Hp, Wp = H + 2, W + 2
    Lp = Hp * Wp                                   # 324 for 16x16
    Lp_pad = ((Lp + 127) // 128) * 128             # 384: lane-dense stores
    ext = 128                                      # vreg-aligned center tap
    Lext = ext + Lp_pad + 128                      # 640 (back wing >= Wp+1)

    # tap t = kh*3 + kw  <->  lane start in the extended buffer
    starts = tuple(ext - (Wp + 1) + kh * Wp + kw
                   for kh in range(3) for kw in range(3))

    # zero-pad spatially, flatten, zero-extend to the aligned extended frame.
    # TODO(synk): at real UNet sizes move this padding into the kernel (stage
    # into a zeroed VMEM extended buffer) to avoid an extra HBM pass.
    xp = jnp.pad(x_nchw.astype(jnp.float32),
                 ((0, 0), (0, 0), (1, 1), (1, 1))).reshape(N, Cin, Lp)
    x_ext = jnp.pad(xp, ((0, 0), (0, 0), (ext, Lext - ext - Lp))
                    ).astype(jnp.bfloat16)

    # (O, I, kh, kw) -> (O, kh, kw, I) -> (O, 9*I): K index = (kh*3+kw)*I + i
    w1 = jnp.transpose(params["w1"], (0, 2, 3, 1)).reshape(Cout, 9 * Cin)
    w2 = jnp.transpose(params["w2"], (0, 2, 3, 1)).reshape(Cout, 9 * Cout)
    w1 = w1.astype(jnp.bfloat16)
    w2 = w2.astype(jnp.bfloat16)
    f1 = jnp.stack([params["g1"], params["b1"], params["t1"]]
                   ).reshape(3, Cout, 1).astype(jnp.float32)
    f2 = jnp.stack([params["g2"], params["b2"], params["t2"]]
                   ).reshape(3, Cout, 1).astype(jnp.float32)
    eps = jnp.stack([params["e1"].reshape(()), params["e2"].reshape(())]
                    ).astype(jnp.float32)

    # interior mask over the padded-flat frame, zero-extended to Lp_pad lanes
    hp = jnp.arange(Hp)[:, None]
    wp = jnp.arange(Wp)[None, :]
    mask = (((hp >= 1) & (hp <= H) & (wp >= 1) & (wp <= W))
            .astype(jnp.float32).reshape(1, Lp))
    mask = jnp.pad(mask, ((0, 0), (0, Lp_pad - Lp)))

    kernel = partial(_unet_block_kernel, H, W, Lp_pad, ext, starts)
    out_flat = pl.pallas_call(
        kernel,
        out_shape=jax.ShapeDtypeStruct((N, Cout, Lp_pad), jnp.float32),
        grid=(N,),
        in_specs=[
            pl.BlockSpec((1, Cin, Lext), lambda n: (n, 0, 0)),
            pl.BlockSpec((Cout, 9 * Cin), lambda n: (0, 0)),
            pl.BlockSpec((Cout, 9 * Cout), lambda n: (0, 0)),
            pl.BlockSpec((3, Cout, 1), lambda n: (0, 0, 0)),
            pl.BlockSpec((3, Cout, 1), lambda n: (0, 0, 0)),
            pl.BlockSpec((1, Lp_pad), lambda n: (0, 0)),
            pl.BlockSpec(memory_space=pltpu.MemorySpace.SMEM),
        ],
        out_specs=pl.BlockSpec((1, Cout, Lp_pad), lambda n: (n, 0, 0)),
        scratch_shapes=[
            pltpu.VMEM((9 * Cin, Lp_pad), jnp.bfloat16),   # stacked-K, layer 1
            pltpu.VMEM((9 * Cout, Lp_pad), jnp.bfloat16),  # stacked-K, layer 2
            pltpu.VMEM((Cout, Lext), jnp.bfloat16),        # staged a1 (padded)
        ],
        compiler_params=pltpu.CompilerParams(
            dimension_semantics=("parallel",)),
    )(x_ext, w1, w2, f1, f2, mask, eps)

    # padded-flat -> NCHW interior (wrapper-side layout plumbing only)
    return out_flat[:, :, :Lp].reshape(N, Cout, Hp, Wp)[:, :, 1:H + 1, 1:W + 1]


# ------------------------- pure-JAX reference -------------------------------
def _ref_conv3x3(x_nchw, w_oihw):
    return jax.lax.conv_general_dilated(
        x_nchw, w_oihw, window_strides=(1, 1), padding=((1, 1), (1, 1)),
        dimension_numbers=("NCHW", "OIHW", "NCHW"))


def _ref_frn(x, g, b, t, eps):
    nu2 = jnp.mean(x * x, axis=(2, 3), keepdims=True)
    xn = x * jax.lax.rsqrt(nu2 + jnp.abs(eps))
    g = g.reshape(1, -1, 1, 1)
    b = b.reshape(1, -1, 1, 1)
    t = t.reshape(1, -1, 1, 1)
    return jnp.maximum(g * xn + b, t)


def _ref_block(x_nchw, p):
    x = jnp.maximum(_ref_frn(_ref_conv3x3(x_nchw, p["w1"]),
                             p["g1"], p["b1"], p["t1"], p["e1"][0]), 0.0)
    x = jnp.maximum(_ref_frn(_ref_conv3x3(x, p["w2"]),
                             p["g2"], p["b2"], p["t2"], p["e2"][0]), 0.0)
    return x


# --------------------------------- main --------------------------------------
if __name__ == "__main__":
    key = jax.random.PRNGKey(0)
    k_x, k_w1, k_w2 = jax.random.split(key, 3)

    N, Cin, Cout, Hs, Ws = 2, 4, 8, 16, 16

    x = jax.random.normal(k_x, (N, Cin, Hs, Ws), dtype=jnp.float32)

    # Deterministic parameter init (matches module shapes / reset_parameters).
    params = {
        "w1": jax.random.normal(k_w1, (Cout, Cin, 3, 3), dtype=jnp.float32) * 0.1,
        "g1": jnp.ones((Cout,), jnp.float32),
        "b1": jnp.zeros((Cout,), jnp.float32),
        "t1": jnp.zeros((Cout,), jnp.float32),
        "e1": jnp.array([1e-6], jnp.float32),
        "w2": jax.random.normal(k_w2, (Cout, Cout, 3, 3), dtype=jnp.float32) * 0.1,
        "g2": jnp.ones((Cout,), jnp.float32),
        "b2": jnp.zeros((Cout,), jnp.float32),
        "t2": jnp.zeros((Cout,), jnp.float32),
        "e2": jnp.array([1e-6], jnp.float32),
    }

    out = jax.block_until_ready(unet_conv_block(x, params))
    ref = jax.block_until_ready(_ref_block(x, params))

    assert out.shape == (N, Cout, Hs, Ws), out.shape
    # bf16 conv operands (f32 accumulation / FRN stats) -> ~1e-2 accuracy.
    assert jnp.allclose(out, ref, atol=3e-2, rtol=3e-2), (
        float(jnp.max(jnp.abs(out - ref))))

    print("KERNEL_OK")
</pallas_src>

<mosaic_0001>
module attributes {stable_mosaic.version = 11 : i64} {
  func.func @_unet_block_kernel(%arg0: i32, %arg1: memref<1x4x640xbf16, #tpu.memory_space<vmem>>, %arg2: memref<8x36xbf16, #tpu.memory_space<vmem>>, %arg3: memref<8x72xbf16, #tpu.memory_space<vmem>>, %arg4: memref<3x8x1xf32, #tpu.memory_space<vmem>>, %arg5: memref<3x8x1xf32, #tpu.memory_space<vmem>>, %arg6: memref<1x384xf32, #tpu.memory_space<vmem>>, %arg7: memref<2xf32, #tpu.memory_space<smem>>, %arg8: memref<1x8x384xf32, #tpu.memory_space<vmem>>, %arg9: memref<36x384xbf16, #tpu.memory_space<vmem>>, %arg10: memref<72x384xbf16, #tpu.memory_space<vmem>>, %arg11: memref<8x640xbf16, #tpu.memory_space<vmem>>) attributes {dimension_semantics = [#tpu.dimension_semantics<parallel>], iteration_bounds = array<i64: 2>, scalar_prefetch = 0 : i64, scratch_operands = 3 : i64, tpu.core_type = #tpu.core_type<tc>, window_params = [{transform_indices = @transform_0, window_bounds = array<i64: 1, 4, 640>}, {pipeline_mode = #tpu.pipeline_mode<synchronous>, transform_indices = @transform_1, window_bounds = array<i64: 8, 36>}, {pipeline_mode = #tpu.pipeline_mode<synchronous>, transform_indices = @transform_2, window_bounds = array<i64: 8, 72>}, {pipeline_mode = #tpu.pipeline_mode<synchronous>, transform_indices = @transform_3, window_bounds = array<i64: 3, 8, 1>}, {pipeline_mode = #tpu.pipeline_mode<synchronous>, transform_indices = @transform_4, window_bounds = array<i64: 3, 8, 1>}, {pipeline_mode = #tpu.pipeline_mode<synchronous>, transform_indices = @transform_5, window_bounds = array<i64: 1, 384>}, {transform_indices = @transform_6, window_bounds = array<i64: 2>}, {transform_indices = @transform_7, window_bounds = array<i64: 1, 8, 384>}]} {
    %c0 = arith.constant 0 : index
    %c0_0 = arith.constant 0 : index
    %0 = vector.load %arg6[%c0, %c0_0] : memref<1x384xf32, #tpu.memory_space<vmem>>, vector<1x384xf32>
    %c0_1 = arith.constant 0 : index
    %c0_2 = arith.constant 0 : index
    %c0_3 = arith.constant 0 : index
    %1 = vector.load %arg1[%c0_1, %c0_2, %c0_3] : memref<1x4x640xbf16, #tpu.memory_space<vmem>>, vector<1x4x640xbf16>
    %2 = vector.shape_cast %1 : vector<1x4x640xbf16> to vector<4x640xbf16>
    %3 = vector.extract_strided_slice %2 {offsets = [0, 109], sizes = [4, 384], strides = [1, 1]} : vector<4x640xbf16> to vector<4x384xbf16>
    %c0_4 = arith.constant 0 : index
    %c0_5 = arith.constant 0 : index
    %4 = vector.load %arg9[%c0_4, %c0_5] : memref<36x384xbf16, #tpu.memory_space<vmem>>, vector<4x384xbf16>
    tpu.vector_store %arg9[%c0_4, %c0_5], %3 {strides = array<i32>} : memref<36x384xbf16, #tpu.memory_space<vmem>>, vector<4x384xbf16>,
    %5 = vector.extract_strided_slice %2 {offsets = [0, 110], sizes = [4, 384], strides = [1, 1]} : vector<4x640xbf16> to vector<4x384xbf16>
    %c4 = arith.constant 4 : index
    %c0_6 = arith.constant 0 : index
    %6 = vector.load %arg9[%c4, %c0_6] : memref<36x384xbf16, #tpu.memory_space<vmem>>, vector<4x384xbf16>
    tpu.vector_store %arg9[%c4, %c0_6], %5 {strides = array<i32>} : memref<36x384xbf16, #tpu.memory_space<vmem>>, vector<4x384xbf16>,
    %7 = vector.extract_strided_slice %2 {offsets = [0, 111], sizes = [4, 384], strides = [1, 1]} : vector<4x640xbf16> to vector<4x384xbf16>
    %c8 = arith.constant 8 : index
    %c0_7 = arith.constant 0 : index
    %8 = vector.load %arg9[%c8, %c0_7] : memref<36x384xbf16, #tpu.memory_space<vmem>>, vector<4x384xbf16>
    tpu.vector_store %arg9[%c8, %c0_7], %7 {strides = array<i32>} : memref<36x384xbf16, #tpu.memory_space<vmem>>, vector<4x384xbf16>,
    %9 = vector.extract_strided_slice %2 {offsets = [0, 127], sizes = [4, 384], strides = [1, 1]} : vector<4x640xbf16> to vector<4x384xbf16>
    %c12 = arith.constant 12 : index
    %c0_8 = arith.constant 0 : index
    %10 = vector.load %arg9[%c12, %c0_8] : memref<36x384xbf16, #tpu.memory_space<vmem>>, vector<4x384xbf16>
    tpu.vector_store %arg9[%c12, %c0_8], %9 {strides = array<i32>} : memref<36x384xbf16, #tpu.memory_space<vmem>>, vector<4x384xbf16>,
    %11 = vector.extract_strided_slice %2 {offsets = [0, 128], sizes = [4, 384], strides = [1, 1]} : vector<4x640xbf16> to vector<4x384xbf16>
    %c16 = arith.constant 16 : index
    %c0_9 = arith.constant 0 : index
    %12 = vector.load %arg9[%c16, %c0_9] : memref<36x384xbf16, #tpu.memory_space<vmem>>, vector<4x384xbf16>
    tpu.vector_store %arg9[%c16, %c0_9], %11 {strides = array<i32>} : memref<36x384xbf16, #tpu.memory_space<vmem>>, vector<4x384xbf16>,
    %13 = vector.extract_strided_slice %2 {offsets = [0, 129], sizes = [4, 384], strides = [1, 1]} : vector<4x640xbf16> to vector<4x384xbf16>
    %c20 = arith.constant 20 : index
    %c0_10 = arith.constant 0 : index
    %14 = vector.load %arg9[%c20, %c0_10] : memref<36x384xbf16, #tpu.memory_space<vmem>>, vector<4x384xbf16>
    tpu.vector_store %arg9[%c20, %c0_10], %13 {strides = array<i32>} : memref<36x384xbf16, #tpu.memory_space<vmem>>, vector<4x384xbf16>,
    %15 = vector.extract_strided_slice %2 {offsets = [0, 145], sizes = [4, 384], strides = [1, 1]} : vector<4x640xbf16> to vector<4x384xbf16>
    %c24 = arith.constant 24 : index
    %c0_11 = arith.constant 0 : index
    %16 = vector.load %arg9[%c24, %c0_11] : memref<36x384xbf16, #tpu.memory_space<vmem>>, vector<4x384xbf16>
    tpu.vector_store %arg9[%c24, %c0_11], %15 {strides = array<i32>} : memref<36x384xbf16, #tpu.memory_space<vmem>>, vector<4x384xbf16>,
    %17 = vector.extract_strided_slice %2 {offsets = [0, 146], sizes = [4, 384], strides = [1, 1]} : vector<4x640xbf16> to vector<4x384xbf16>
    %c28 = arith.constant 28 : index
    %c0_12 = arith.constant 0 : index
    %18 = vector.load %arg9[%c28, %c0_12] : memref<36x384xbf16, #tpu.memory_space<vmem>>, vector<4x384xbf16>
    tpu.vector_store %arg9[%c28, %c0_12], %17 {strides = array<i32>} : memref<36x384xbf16, #tpu.memory_space<vmem>>, vector<4x384xbf16>,
    %19 = vector.extract_strided_slice %2 {offsets = [0, 147], sizes = [4, 384], strides = [1, 1]} : vector<4x640xbf16> to vector<4x384xbf16>
    %c32 = arith.constant 32 : index
    %c0_13 = arith.constant 0 : index
    %20 = vector.load %arg9[%c32, %c0_13] : memref<36x384xbf16, #tpu.memory_space<vmem>>, vector<4x384xbf16>
    tpu.vector_store %arg9[%c32, %c0_13], %19 {strides = array<i32>} : memref<36x384xbf16, #tpu.memory_space<vmem>>, vector<4x384xbf16>,
    %c0_14 = arith.constant 0 : index
    %c0_15 = arith.constant 0 : index
    %21 = vector.load %arg2[%c0_14, %c0_15] : memref<8x36xbf16, #tpu.memory_space<vmem>>, vector<8x36xbf16>
    %c0_16 = arith.constant 0 : index
    %c0_17 = arith.constant 0 : index
    %22 = vector.load %arg9[%c0_16, %c0_17] : memref<36x384xbf16, #tpu.memory_space<vmem>>, vector<36x384xbf16>
    %cst = arith.constant dense<0.000000e+00> : vector<8x384xf32>
    %23 = tpu.matmul %21, %22, %cst {dimension_numbers = #tpu.dot_dimension_numbers<[1], [0], [0], [1], [0, 0, 1, 1], [], []>} : vector<8x36xbf16>, vector<36x384xbf16>, vector<8x384xf32> -> vector<8x384xf32>
    %c0_18 = arith.constant 0 : index
    %24 = memref.load %arg7[%c0_18] : memref<2xf32, #tpu.memory_space<smem>>
    %25 = vector.broadcast %0 : vector<1x384xf32> to vector<8x384xf32>
    %26 = arith.mulf %23, %25 : vector<8x384xf32>
    %27 = arith.mulf %26, %26 : vector<8x384xf32>
    %cst_19 = arith.constant dense<0.000000e+00> : vector<8xf32>
    %28 = vector.multi_reduction <add>, %27, %cst_19 [1] : vector<8x384xf32> to vector<8xf32>
    %29 = vector.shape_cast %28 : vector<8xf32> to vector<8x1xf32>
    %cst_20 = arith.constant 3.906250e-03 : f32
    %30 = vector.broadcast %cst_20 : f32 to vector<8x1xf32>
    %31 = arith.mulf %29, %30 : vector<8x1xf32>
    %32 = math.absf %24 : f32
    %33 = vector.broadcast %32 : f32 to vector<8x1xf32>
    %34 = arith.addf %31, %33 : vector<8x1xf32>
    %35 = math.rsqrt %34 : vector<8x1xf32>
    %36 = vector.broadcast %35 : vector<8x1xf32> to vector<8x384xf32>
    %37 = arith.mulf %26, %36 : vector<8x384xf32>
    %c0_21 = arith.constant 0 : index
    %c0_22 = arith.constant 0 : index
    %c0_23 = arith.constant 0 : index
    %38 = vector.load %arg4[%c0_21, %c0_22, %c0_23] : memref<3x8x1xf32, #tpu.memory_space<vmem>>, vector<1x8x1xf32>
    %39 = vector.shape_cast %38 : vector<1x8x1xf32> to vector<8x1xf32>
    %40 = vector.broadcast %39 : vector<8x1xf32> to vector<8x384xf32>
    %41 = arith.mulf %40, %37 : vector<8x384xf32>
    %c1 = arith.constant 1 : index
    %c0_24 = arith.constant 0 : index
    %c0_25 = arith.constant 0 : index
    %42 = vector.load %arg4[%c1, %c0_24, %c0_25] : memref<3x8x1xf32, #tpu.memory_space<vmem>>, vector<1x8x1xf32>
    %43 = vector.shape_cast %42 : vector<1x8x1xf32> to vector<8x1xf32>
    %44 = vector.broadcast %43 : vector<8x1xf32> to vector<8x384xf32>
    %45 = arith.addf %41, %44 : vector<8x384xf32>
    %c2 = arith.constant 2 : index
    %c0_26 = arith.constant 0 : index
    %c0_27 = arith.constant 0 : index
    %46 = vector.load %arg4[%c2, %c0_26, %c0_27] : memref<3x8x1xf32, #tpu.memory_space<vmem>>, vector<1x8x1xf32>
    %47 = vector.shape_cast %46 : vector<1x8x1xf32> to vector<8x1xf32>
    %48 = vector.broadcast %47 : vector<8x1xf32> to vector<8x384xf32>
    %49 = arith.maximumf %45, %48 : vector<8x384xf32>
    %cst_28 = arith.constant 0.000000e+00 : f32
    %50 = vector.broadcast %cst_28 : f32 to vector<8x384xf32>
    %51 = arith.maximumf %49, %50 : vector<8x384xf32>
    %52 = vector.broadcast %0 : vector<1x384xf32> to vector<8x384xf32>
    %53 = arith.mulf %51, %52 : vector<8x384xf32>
    %cst_29 = arith.constant 0.000000e+00 : bf16
    %54 = vector.broadcast %cst_29 : bf16 to vector<8x128xbf16>
    %c0_30 = arith.constant 0 : index
    %c0_31 = arith.constant 0 : index
    %55 = vector.load %arg11[%c0_30, %c0_31] : memref<8x640xbf16, #tpu.memory_space<vmem>>, vector<8x128xbf16>
    tpu.vector_store %arg11[%c0_30, %c0_31], %54 {strides = array<i32>} : memref<8x640xbf16, #tpu.memory_space<vmem>>, vector<8x128xbf16>,
    %cst_32 = arith.constant 0.000000e+00 : bf16
    %56 = vector.broadcast %cst_32 : bf16 to vector<8x128xbf16>
    %c0_33 = arith.constant 0 : index
    %c512 = arith.constant 512 : index
    %57 = vector.load %arg11[%c0_33, %c512] : memref<8x640xbf16, #tpu.memory_space<vmem>>, vector<8x128xbf16>
    tpu.vector_store %arg11[%c0_33, %c512], %56 {strides = array<i32>} : memref<8x640xbf16, #tpu.memory_space<vmem>>, vector<8x128xbf16>,
    %58 = arith.truncf %53 : vector<8x384xf32> to vector<8x384xbf16>
    %c0_34 = arith.constant 0 : index
    %c128 = arith.constant 128 : index
    %59 = vector.load %arg11[%c0_34, %c128] : memref<8x640xbf16, #tpu.memory_space<vmem>>, vector<8x384xbf16>
    tpu.vector_store %arg11[%c0_34, %c128], %58 {strides = array<i32>} : memref<8x640xbf16, #tpu.memory_space<vmem>>, vector<8x384xbf16>,
    %c0_35 = arith.constant 0 : index
    %c0_36 = arith.constant 0 : index
    %60 = vector.load %arg11[%c0_35, %c0_36] : memref<8x640xbf16, #tpu.memory_space<vmem>>, vector<8x640xbf16>
    %61 = vector.extract_strided_slice %60 {offsets = [0, 109], sizes = [8, 384], strides = [1, 1]} : vector<8x640xbf16> to vector<8x384xbf16>
    %c0_37 = arith.constant 0 : index
    %c0_38 = arith.constant 0 : index
    %62 = vector.load %arg10[%c0_37, %c0_38] : memref<72x384xbf16, #tpu.memory_space<vmem>>, vector<8x384xbf16>
    tpu.vector_store %arg10[%c0_37, %c0_38], %61 {strides = array<i32>} : memref<72x384xbf16, #tpu.memory_space<vmem>>, vector<8x384xbf16>,
    %63 = vector.extract_strided_slice %60 {offsets = [0, 110], sizes = [8, 384], strides = [1, 1]} : vector<8x640xbf16> to vector<8x384xbf16>
    %c8_39 = arith.constant 8 : index
    %c0_40 = arith.constant 0 : index
    %64 = vector.load %arg10[%c8_39, %c0_40] : memref<72x384xbf16, #tpu.memory_space<vmem>>, vector<8x384xbf16>
    tpu.vector_store %arg10[%c8_39, %c0_40], %63 {strides = array<i32>} : memref<72x384xbf16, #tpu.memory_space<vmem>>, vector<8x384xbf16>,
    %65 = vector.extract_strided_slice %60 {offsets = [0, 111], sizes = [8, 384], strides = [1, 1]} : vector<8x640xbf16> to vector<8x384xbf16>
    %c16_41 = arith.constant 16 : index
    %c0_42 = arith.constant 0 : index
    %66 = vector.load %arg10[%c16_41, %c0_42] : memref<72x384xbf16, #tpu.memory_space<vmem>>, vector<8x384xbf16>
    tpu.vector_store %arg10[%c16_41, %c0_42], %65 {strides = array<i32>} : memref<72x384xbf16, #tpu.memory_space<vmem>>, vector<8x384xbf16>,
    %67 = vector.extract_strided_slice %60 {offsets = [0, 127], sizes = [8, 384], strides = [1, 1]} : vector<8x640xbf16> to vector<8x384xbf16>
    %c24_43 = arith.constant 24 : index
    %c0_44 = arith.constant 0 : index
    %68 = vector.load %arg10[%c24_43, %c0_44] : memref<72x384xbf16, #tpu.memory_space<vmem>>, vector<8x384xbf16>
    tpu.vector_store %arg10[%c24_43, %c0_44], %67 {strides = array<i32>} : memref<72x384xbf16, #tpu.memory_space<vmem>>, vector<8x384xbf16>,
    %69 = vector.extract_strided_slice %60 {offsets = [0, 128], sizes = [8, 384], strides = [1, 1]} : vector<8x640xbf16> to vector<8x384xbf16>
    %c32_45 = arith.constant 32 : index
    %c0_46 = arith.constant 0 : index
    %70 = vector.load %arg10[%c32_45, %c0_46] : memref<72x384xbf16, #tpu.memory_space<vmem>>, vector<8x384xbf16>
    tpu.vector_store %arg10[%c32_45, %c0_46], %69 {strides = array<i32>} : memref<72x384xbf16, #tpu.memory_space<vmem>>, vector<8x384xbf16>,
    %71 = vector.extract_strided_slice %60 {offsets = [0, 129], sizes = [8, 384], strides = [1, 1]} : vector<8x640xbf16> to vector<8x384xbf16>
    %c40 = arith.constant 40 : index
    %c0_47 = arith.constant 0 : index
    %72 = vector.load %arg10[%c40, %c0_47] : memref<72x384xbf16, #tpu.memory_space<vmem>>, vector<8x384xbf16>
    tpu.vector_store %arg10[%c40, %c0_47], %71 {strides = array<i32>} : memref<72x384xbf16, #tpu.memory_space<vmem>>, vector<8x384xbf16>,
    %73 = vector.extract_strided_slice %60 {offsets = [0, 145], sizes = [8, 384], strides = [1, 1]} : vector<8x640xbf16> to vector<8x384xbf16>
    %c48 = arith.constant 48 : index
    %c0_48 = arith.constant 0 : index
    %74 = vector.load %arg10[%c48, %c0_48] : memref<72x384xbf16, #tpu.memory_space<vmem>>, vector<8x384xbf16>
    tpu.vector_store %arg10[%c48, %c0_48], %73 {strides = array<i32>} : memref<72x384xbf16, #tpu.memory_space<vmem>>, vector<8x384xbf16>,
    %75 = vector.extract_strided_slice %60 {offsets = [0, 146], sizes = [8, 384], strides = [1, 1]} : vector<8x640xbf16> to vector<8x384xbf16>
    %c56 = arith.constant 56 : index
    %c0_49 = arith.constant 0 : index
    %76 = vector.load %arg10[%c56, %c0_49] : memref<72x384xbf16, #tpu.memory_space<vmem>>, vector<8x384xbf16>
    tpu.vector_store %arg10[%c56, %c0_49], %75 {strides = array<i32>} : memref<72x384xbf16, #tpu.memory_space<vmem>>, vector<8x384xbf16>,
    %77 = vector.extract_strided_slice %60 {offsets = [0, 147], sizes = [8, 384], strides = [1, 1]} : vector<8x640xbf16> to vector<8x384xbf16>
    %c64 = arith.constant 64 : index
    %c0_50 = arith.constant 0 : index
    %78 = vector.load %arg10[%c64, %c0_50] : memref<72x384xbf16, #tpu.memory_space<vmem>>, vector<8x384xbf16>
    tpu.vector_store %arg10[%c64, %c0_50], %77 {strides = array<i32>} : memref<72x384xbf16, #tpu.memory_space<vmem>>, vector<8x384xbf16>,
    %c0_51 = arith.constant 0 : index
    %c0_52 = arith.constant 0 : index
    %79 = vector.load %arg3[%c0_51, %c0_52] : memref<8x72xbf16, #tpu.memory_space<vmem>>, vector<8x72xbf16>
    %c0_53 = arith.constant 0 : index
    %c0_54 = arith.constant 0 : index
    %80 = vector.load %arg10[%c0_53, %c0_54] : memref<72x384xbf16, #tpu.memory_space<vmem>>, vector<72x384xbf16>
    %cst_55 = arith.constant dense<0.000000e+00> : vector<8x384xf32>
    %81 = tpu.matmul %79, %80, %cst_55 {dimension_numbers = #tpu.dot_dimension_numbers<[1], [0], [0], [1], [0, 0, 1, 1], [], []>} : vector<8x72xbf16>, vector<72x384xbf16>, vector<8x384xf32> -> vector<8x384xf32>
    %c1_56 = arith.constant 1 : index
    %82 = memref.load %arg7[%c1_56] : memref<2xf32, #tpu.memory_space<smem>>
    %83 = vector.broadcast %0 : vector<1x384xf32> to vector<8x384xf32>
    %84 = arith.mulf %81, %83 : vector<8x384xf32>
    %85 = arith.mulf %84, %84 : vector<8x384xf32>
    %cst_57 = arith.constant dense<0.000000e+00> : vector<8xf32>
    %86 = vector.multi_reduction <add>, %85, %cst_57 [1] : vector<8x384xf32> to vector<8xf32>
    %87 = vector.shape_cast %86 : vector<8xf32> to vector<8x1xf32>
    %cst_58 = arith.constant 3.906250e-03 : f32
    %88 = vector.broadcast %cst_58 : f32 to vector<8x1xf32>
    %89 = arith.mulf %87, %88 : vector<8x1xf32>
    %90 = math.absf %82 : f32
    %91 = vector.broadcast %90 : f32 to vector<8x1xf32>
    %92 = arith.addf %89, %91 : vector<8x1xf32>
    %93 = math.rsqrt %92 : vector<8x1xf32>
    %94 = vector.broadcast %93 : vector<8x1xf32> to vector<8x384xf32>
    %95 = arith.mulf %84, %94 : vector<8x384xf32>
    %c0_59 = arith.constant 0 : index
    %c0_60 = arith.constant 0 : index
    %c0_61 = arith.constant 0 : index
    %96 = vector.load %arg5[%c0_59, %c0_60, %c0_61] : memref<3x8x1xf32, #tpu.memory_space<vmem>>, vector<1x8x1xf32>
    %97 = vector.shape_cast %96 : vector<1x8x1xf32> to vector<8x1xf32>
    %98 = vector.broadcast %97 : vector<8x1xf32> to vector<8x384xf32>
    %99 = arith.mulf %98, %95 : vector<8x384xf32>
    %c1_62 = arith.constant 1 : index
    %c0_63 = arith.constant 0 : index
    %c0_64 = arith.constant 0 : index
    %100 = vector.load %arg5[%c1_62, %c0_63, %c0_64] : memref<3x8x1xf32, #tpu.memory_space<vmem>>, vector<1x8x1xf32>
    %101 = vector.shape_cast %100 : vector<1x8x1xf32> to vector<8x1xf32>
    %102 = vector.broadcast %101 : vector<8x1xf32> to vector<8x384xf32>
    %103 = arith.addf %99, %102 : vector<8x384xf32>
    %c2_65 = arith.constant 2 : index
    %c0_66 = arith.constant 0 : index
    %c0_67 = arith.constant 0 : index
    %104 = vector.load %arg5[%c2_65, %c0_66, %c0_67] : memref<3x8x1xf32, #tpu.memory_space<vmem>>, vector<1x8x1xf32>
    %105 = vector.shape_cast %104 : vector<1x8x1xf32> to vector<8x1xf32>
    %106 = vector.broadcast %105 : vector<8x1xf32> to vector<8x384xf32>
    %107 = arith.maximumf %103, %106 : vector<8x384xf32>
    %cst_68 = arith.constant 0.000000e+00 : f32
    %108 = vector.broadcast %cst_68 : f32 to vector<8x384xf32>
    %109 = arith.maximumf %107, %108 : vector<8x384xf32>
    %110 = vector.broadcast %0 : vector<1x384xf32> to vector<8x384xf32>
    %111 = arith.mulf %109, %110 : vector<8x384xf32>
    %c0_69 = arith.constant 0 : index
    %c0_70 = arith.constant 0 : index
    %c0_71 = arith.constant 0 : index
    %112 = vector.load %arg8[%c0_69, %c0_70, %c0_71] : memref<1x8x384xf32, #tpu.memory_space<vmem>>, vector<1x8x384xf32>
    %113 = vector.shape_cast %112 : vector<1x8x384xf32> to vector<8x384xf32>
    %114 = vector.shape_cast %111 : vector<8x384xf32> to vector<1x8x384xf32>
    tpu.vector_store %arg8[%c0_69, %c0_70, %c0_71], %114 {strides = array<i32>} : memref<1x8x384xf32, #tpu.memory_space<vmem>>, vector<1x8x384xf32>,
    return
  }
  func.func @transform_0(%arg0: i32) -> (i32, i32, i32) {
    %c0_i32 = arith.constant 0 : i32
    %c0_i32_0 = arith.constant 0 : i32
    %c0_i32_1 = arith.constant 0 : i32
    return %arg0, %c0_i32, %c0_i32_0 : i32, i32, i32
  }
  func.func @transform_1(%arg0: i32) -> (i32, i32) {
    %c0_i32 = arith.constant 0 : i32
    %c0_i32_0 = arith.constant 0 : i32
    %c0_i32_1 = arith.constant 0 : i32
    return %c0_i32, %c0_i32_0 : i32, i32
  }
  func.func @transform_2(%arg0: i32) -> (i32, i32) {
    %c0_i32 = arith.constant 0 : i32
    %c0_i32_0 = arith.constant 0 : i32
    %c0_i32_1 = arith.constant 0 : i32
    return %c0_i32, %c0_i32_0 : i32, i32
  }
  func.func @transform_3(%arg0: i32) -> (i32, i32, i32) {
    %c0_i32 = arith.constant 0 : i32
    %c0_i32_0 = arith.constant 0 : i32
    %c0_i32_1 = arith.constant 0 : i32
    %c0_i32_2 = arith.constant 0 : i32
    return %c0_i32, %c0_i32_0, %c0_i32_1 : i32, i32, i32
  }
  func.func @transform_4(%arg0: i32) -> (i32, i32, i32) {
    %c0_i32 = arith.constant 0 : i32
    %c0_i32_0 = arith.constant 0 : i32
    %c0_i32_1 = arith.constant 0 : i32
    %c0_i32_2 = arith.constant 0 : i32
    return %c0_i32, %c0_i32_0, %c0_i32_1 : i32, i32, i32
  }
  func.func @transform_5(%arg0: i32) -> (i32, i32) {
    %c0_i32 = arith.constant 0 : i32
    %c0_i32_0 = arith.constant 0 : i32
    %c0_i32_1 = arith.constant 0 : i32
    return %c0_i32, %c0_i32_0 : i32, i32
  }
  func.func @transform_6(%arg0: i32) -> i32 {
    %c0_i32 = arith.constant 0 : i32
    %c0_i32_0 = arith.constant 0 : i32
    return %c0_i32 : i32
  }
  func.func @transform_7(%arg0: i32) -> (i32, i32, i32) {
    %c0_i32 = arith.constant 0 : i32
    %c0_i32_0 = arith.constant 0 : i32
    %c0_i32_1 = arith.constant 0 : i32
    return %arg0, %c0_i32, %c0_i32_0 : i32, i32, i32
  }
}

</mosaic_0001>

<llo_original>
// kernel: unet_conv_block.1
$region0: #{unet_conv_block.1}
  #allocation0 [shape = 'u32[]', space=smem, size = 0x4, offset = 0x4, fixed_abs, tag = 'smem constant byte address 0x4 - core index']
  #allocation1 [shape = 'u32[72,128]{1,0:T(1,128)}', space=vmem, size = 0x9000, scoped, tag = 'internal scratch']
  #allocation2 [shape = 'bf16[36,384]{1,0:T(8,128)(2,1)}', space=vmem, size = 0x7800, scoped, tag = 'scratch operand']
  #allocation3 [shape = 'bf16[72,384]{1,0:T(8,128)(2,1)}', space=vmem, size = 0xd800, scoped, tag = 'scratch operand']
  #allocation4 [shape = 'bf16[8,640]{1,0:T(8,128)(2,1)}', space=vmem, size = 0x2800, scoped, tag = 'scratch operand']
  %s0 = inlined_call_operand.vmem [shape: bf16[2,4,640], index: 0, kind: input, shape index: {}]
  %s1 = inlined_call_operand.vmem [shape: bf16[8,36], index: 1, kind: input, shape index: {}]
  %s2 = inlined_call_operand.vmem [shape: bf16[8,72], index: 2, kind: input, shape index: {}]
  %s3 = inlined_call_operand.vmem [shape: f32[3,8,1], index: 3, kind: input, shape index: {}]
  %s4 = inlined_call_operand.vmem [shape: f32[3,8,1], index: 4, kind: input, shape index: {}]
  %s5 = inlined_call_operand.vmem [shape: f32[1,384], index: 5, kind: input, shape index: {}]
  %s6 = inlined_call_operand.vmem [shape: f32[2], index: 6, kind: input, shape index: {}]
  %s7 = inlined_call_operand.vmem [shape: f32[2,8,384], index: 7, kind: output, shape index: {}]
  %s8 = sld [smem:[#allocation0]]
  $region65: #{unet_conv_block.1} parent=0
    _
  %s10 = ssub.s32 1, %s8
  %s11 = scalar_select 0, %s10, %s8
  $region1: #{unet_conv_block.1} parent=0
    #allocation5 [shape = 'u8[512]{0}', space=smem, size = 0x200, scoped, tag = 'input window, operand 6, single buffered']
    #allocation6 [shape = 's32[2]{0}', space=sflag, size = 0x8, scoped, tag = 'scoped memory for unet_conv_block.1']
    %12 = vsyncpa [#allocation6], 0
    loop: start=0, step=1, limit=4
    $region2: #{unet_conv_block.1} parent=1 // loop_pre_header
      _
    $region3: #{unet_conv_block.1} parent=1 // loop_header
      %s14 = sphi 0, %s18
      %p15 = scmp.ge.s32.totalorder %s14, 4
      %s24 = sphi 0, %s26
      %s27 = sphi 0, %s24
      %s28 = sphi 0, %s27
      %s44 = sphi 0, %s28
      %s48 = sphi 0, %s48
      %s50 = sphi 0, %s48
      %s51 = sphi 0, %s50
      %s65 = sphi 0, %s51
      %s69 = sphi 0, %s69
      %s71 = sphi 0, %s69
      %s72 = sphi 0, %s71
      %s86 = sphi 0, %s72
      %s90 = sphi 0, %s90
      %s92 = sphi 0, %s90
      %s93 = sphi 0, %s92
      %s107 = sphi 0, %s93
      %s111 = sphi 0, %s111
      %s113 = sphi 0, %s111
      %s114 = sphi 0, %s113
      %s128 = sphi 0, %s114
      %s132 = sphi 0, %s132
      %s134 = sphi 0, %s132
      %s135 = sphi 0, %s134
      %s149 = sphi 0, %s135
      %s153 = sphi 0, %s153
      %s155 = sphi 0, %s153
      %s156 = sphi 0, %s155
      %s170 = sphi 0, %s156
      %s176 = sphi 0, %s178
      %s179 = sphi 0, %s176
      %s180 = sphi 0, %s179
      %s196 = sphi 0, %s180
    $region4: #{unet_conv_block.1} parent=1 // loop_header_branch
      %17 = sbr.rel (%p15) target = $region8
    $region5: #{unet_conv_block.1} parent=1 // loop_body
      %s19 = ssub.s32 %s14, 1
      %s20 = ssub.s32 %s14, 2
      %s21 = sadd.s32 %s14, 1
      %s22 = ssub.s32 %s14, %s21
      %p23 = scmp.eq.s32.totalorder %s22, 0
      %s25 = sadd.s32 %s24, 1
      %s26 = scalar_select %p23, %s24, %s25
      %p29 = pneg %p23
      %p30 = scmp.eq.s32.totalorder %s14, 1
      %p31 = por %p29, %p30
      %p32 = scmp.ne.s32.totalorder %s24, %s27
      %p33 = scmp.eq.s32.totalorder %s14, 0
      %p34 = por %p32, %p33
      %p35 = scmp.ne.s32.totalorder %s24, %s27
      %p36 = scmp.eq.s32.totalorder %s19, 1
      %p37 = por %p35, %p36
      %p38 = scmp.ne.s32.totalorder %s27, %s28
      %p39 = scmp.eq.s32.totalorder %s19, 0
      %p40 = por %p38, %p39
      %p41 = scmp.ne.s32.totalorder %s27, %s28
      %p42 = scmp.eq.s32.totalorder %s20, 1
      %p43 = por %p41, %p42
      %p45 = scmp.ne.s32.totalorder %s28, %s44
      %p46 = scmp.eq.s32.totalorder %s20, 0
      %p47 = por %p45, %p46
      %s49 = sadd.s32 %s48, 1
      %p52 = scmp.eq.s32.totalorder %s14, 1
      %p53 = scmp.ne.s32.totalorder %s48, %s50
      %p54 = scmp.eq.s32.totalorder %s14, 0
      %p55 = por %p53, %p54
      %p56 = scmp.ne.s32.totalorder %s48, %s50
      %p57 = scmp.eq.s32.totalorder %s19, 1
      %p58 = por %p56, %p57
      %p59 = scmp.ne.s32.totalorder %s50, %s51
      %p60 = scmp.eq.s32.totalorder %s19, 0
      %p61 = por %p59, %p60
      %p62 = scmp.ne.s32.totalorder %s50, %s51
      %p63 = scmp.eq.s32.totalorder %s20, 1
      %p64 = por %p62, %p63
      %p66 = scmp.ne.s32.totalorder %s51, %s65
      %p67 = scmp.eq.s32.totalorder %s20, 0
      %p68 = por %p66, %p67
      %s70 = sadd.s32 %s69, 1
      %p73 = scmp.eq.s32.totalorder %s14, 1
      %p74 = scmp.ne.s32.totalorder %s69, %s71
      %p75 = scmp.eq.s32.totalorder %s14, 0
      %p76 = por %p74, %p75
      %p77 = scmp.ne.s32.totalorder %s69, %s71
      %p78 = scmp.eq.s32.totalorder %s19, 1
      %p79 = por %p77, %p78
      %p80 = scmp.ne.s32.totalorder %s71, %s72
      %p81 = scmp.eq.s32.totalorder %s19, 0
      %p82 = por %p80, %p81
      %p83 = scmp.ne.s32.totalorder %s71, %s72
      %p84 = scmp.eq.s32.totalorder %s20, 1
      %p85 = por %p83, %p84
      %p87 = scmp.ne.s32.totalorder %s72, %s86
      %p88 = scmp.eq.s32.totalorder %s20, 0
      %p89 = por %p87, %p88
      %s91 = sadd.s32 %s90, 1
      %p94 = scmp.eq.s32.totalorder %s14, 1
      %p95 = scmp.ne.s32.totalorder %s90, %s92
      %p96 = scmp.eq.s32.totalorder %s14, 0
      %p97 = por %p95, %p96
      %p98 = scmp.ne.s32.totalorder %s90, %s92
      %p99 = scmp.eq.s32.totalorder %s19, 1
      %p100 = por %p98, %p99
      %p101 = scmp.ne.s32.totalorder %s92, %s93
      %p102 = scmp.eq.s32.totalorder %s19, 0
      %p103 = por %p101, %p102
      %p104 = scmp.ne.s32.totalorder %s92, %s93
      %p105 = scmp.eq.s32.totalorder %s20, 1
      %p106 = por %p104, %p105
      %p108 = scmp.ne.s32.totalorder %s93, %s107
      %p109 = scmp.eq.s32.totalorder %s20, 0
      %p110 = por %p108, %p109
      %s112 = sadd.s32 %s111, 1
      %p115 = scmp.eq.s32.totalorder %s14, 1
      %p116 = scmp.ne.s32.totalorder %s111, %s113
      %p117 = scmp.eq.s32.totalorder %s14, 0
      %p118 = por %p116, %p117
      %p119 = scmp.ne.s32.totalorder %s111, %s113
      %p120 = scmp.eq.s32.totalorder %s19, 1
      %p121 = por %p119, %p120
      %p122 = scmp.ne.s32.totalorder %s113, %s114
      %p123 = scmp.eq.s32.totalorder %s19, 0
      %p124 = por %p122, %p123
      %p125 = scmp.ne.s32.totalorder %s113, %s114
      %p126 = scmp.eq.s32.totalorder %s20, 1
      %p127 = por %p125, %p126
      %p129 = scmp.ne.s32.totalorder %s114, %s128
      %p130 = scmp.eq.s32.totalorder %s20, 0
      %p131 = por %p129, %p130
      %s133 = sadd.s32 %s132, 1
      %p136 = scmp.eq.s32.totalorder %s14, 1
      %p137 = scmp.ne.s32.totalorder %s132, %s134
      %p138 = scmp.eq.s32.totalorder %s14, 0
      %p139 = por %p137, %p138
      %p140 = scmp.ne.s32.totalorder %s132, %s134
      %p141 = scmp.eq.s32.totalorder %s19, 1
      %p142 = por %p140, %p141
      %p143 = scmp.ne.s32.totalorder %s134, %s135
      %p144 = scmp.eq.s32.totalorder %s19, 0
      %p145 = por %p143, %p144
      %p146 = scmp.ne.s32.totalorder %s134, %s135
      %p147 = scmp.eq.s32.totalorder %s20, 1
      %p148 = por %p146, %p147
      %p150 = scmp.ne.s32.totalorder %s135, %s149
      %p151 = scmp.eq.s32.totalorder %s20, 0
      %p152 = por %p150, %p151
      %s154 = sadd.s32 %s153, 1
      %p157 = scmp.eq.s32.totalorder %s14, 1
      %p158 = scmp.ne.s32.totalorder %s153, %s155
      %p159 = scmp.eq.s32.totalorder %s14, 0
      %p160 = por %p158, %p159
      %p161 = scmp.ne.s32.totalorder %s153, %s155
      %p162 = scmp.eq.s32.totalorder %s19, 1
      %p163 = por %p161, %p162
      %p164 = scmp.ne.s32.totalorder %s155, %s156
      %p165 = scmp.eq.s32.totalorder %s19, 0
      %p166 = por %p164, %p165
      %p167 = scmp.ne.s32.totalorder %s155, %s156
      %p168 = scmp.eq.s32.totalorder %s20, 1
      %p169 = por %p167, %p168
      %p171 = scmp.ne.s32.totalorder %s156, %s170
      %p172 = scmp.eq.s32.totalorder %s20, 0
      %p173 = por %p171, %p172
      %s174 = ssub.s32 %s14, %s21
      %p175 = scmp.eq.s32.totalorder %s174, 0
      %s177 = sadd.s32 %s176, 1
      %s178 = scalar_select %p175, %s176, %s177
      %p181 = pneg %p175
      %p182 = scmp.eq.s32.totalorder %s14, 1
      %p183 = por %p181, %p182
      %p184 = scmp.ne.s32.totalorder %s176, %s179
      %p185 = scmp.eq.s32.totalorder %s14, 0
      %p186 = por %p184, %p185
      %p187 = scmp.ne.s32.totalorder %s176, %s179
      %p188 = scmp.eq.s32.totalorder %s19, 1
      %p189 = por %p187, %p188
      %p190 = scmp.ne.s32.totalorder %s179, %s180
      %p191 = scmp.eq.s32.totalorder %s19, 0
      %p192 = por %p190, %p191
      %p193 = scmp.ne.s32.totalorder %s179, %s180
      %p194 = scmp.eq.s32.totalorder %s20, 1
      %p195 = por %p193, %p194
      %p197 = scmp.ne.s32.totalorder %s180, %s196
      %p198 = scmp.eq.s32.totalorder %s20, 0
      %p199 = por %p197, %p198
      %p200 = scmp.le.s32.totalorder 1, %s14
      %p201 = scmp.lt.s32.totalorder %s14, 3
      %p202 = pnand %p200, %p201
      %p203 = pneg %p202
      // Predicated region
      $region9: #{unet_conv_block.1} parent=5 // pred_check
        _
      $region10: #{unet_conv_block.1} parent=5 // pred_check_branch
        %205 = sbr.rel (%p202) target = $region12
      $region11: #{unet_conv_block.1} parent=5 // pred_region
        %s206 = ssub.s32 %s14, 1
        // Predicated region
        $region13: #{unet_conv_block.1} parent=11 // pred_check
          %p207 = pneg %p61
        $region14: #{unet_conv_block.1} parent=11 // pred_check_branch
          %209 = sbr.rel (%p207) target = $region16
        $region15: #{unet_conv_block.1} parent=11 // pred_region
          _
        $region16: #{unet_conv_block.1} parent=11 // pred_fallthru
          _
        // Predicated region
        $region17: #{unet_conv_block.1} parent=11 // pred_check
          %p210 = pneg %p82
        $region18: #{unet_conv_block.1} parent=11 // pred_check_branch
          %212 = sbr.rel (%p210) target = $region20
        $region19: #{unet_conv_block.1} parent=11 // pred_region
          _
        $region20: #{unet_conv_block.1} parent=11 // pred_fallthru
          _
        // Predicated region
        $region21: #{unet_conv_block.1} parent=11 // pred_check
          %p213 = pneg %p103
        $region22: #{unet_conv_block.1} parent=11 // pred_check_branch
          %215 = sbr.rel (%p213) target = $region24
        $region23: #{unet_conv_block.1} parent=11 // pred_region
          _
        $region24: #{unet_conv_block.1} parent=11 // pred_fallthru
          _
        // Predicated region
        $region25: #{unet_conv_block.1} parent=11 // pred_check
          %p216 = pneg %p124
        $region26: #{unet_conv_block.1} parent=11 // pred_check_branch
          %218 = sbr.rel (%p216) target = $region28
        $region27: #{unet_conv_block.1} parent=11 // pred_region
          _
        $region28: #{unet_conv_block.1} parent=11 // pred_fallthru
          _
        // Predicated region
        $region29: #{unet_conv_block.1} parent=11 // pred_check
          %p219 = pneg %p145
        $region30: #{unet_conv_block.1} parent=11 // pred_check_branch
          %221 = sbr.rel (%p219) target = $region32
        $region31: #{unet_conv_block.1} parent=11 // pred_region
          _
        $region32: #{unet_conv_block.1} parent=11 // pred_fallthru
          _
        // Predicated region
        $region33: #{unet_conv_block.1} parent=11 // pred_check
          %p222 = pneg %p166
        $region34: #{unet_conv_block.1} parent=11 // pred_check_branch
          %224 = sbr.rel (%p222) target = $region36
        $region35: #{unet_conv_block.1} parent=11 // pred_region
          %226 = vsyncadd [#allocation6], 0
          %s228 = sshll.u32 %s6, 4
          %s229 = int_to_ptr.vmem [resolvable:$true] %s228
          %231 = dma.vmem_to_smem %s229, 16, [#allocation5], [#allocation6]
        $region36: #{unet_conv_block.1} parent=11 // pred_fallthru
          _
      $region12: #{unet_conv_block.1} parent=5 // pred_fallthru
        _
      %p232 = scmp.lt.s32.totalorder %s14, 2
      // Predicated region
      $region37: #{unet_conv_block.1} parent=5 // pred_check
        %p233 = pneg %p232
      $region38: #{unet_conv_block.1} parent=5 // pred_check_branch
        %235 = sbr.rel (%p233) target = $region40
      $region39: #{unet_conv_block.1} parent=5 // pred_region
        // Predicated region
        $region41: #{unet_conv_block.1} parent=39 // pred_check
          %p236 = pneg %p34
        $region42: #{unet_conv_block.1} parent=39 // pred_check_branch
          %238 = sbr.rel (%p236) target = $region44
        $region43: #{unet_conv_block.1} parent=39 // pred_region
          %p239 = scmp.lt.s32.totalorder %s14, 1
          %s240 = scalar_select %p239, %s14, 1
          %s241 = smul.addr %s240, 5
          %s242 = smul.addr %s241, 2
          %s243 = scalar_lea.vmem %s0, %s242
        $region44: #{unet_conv_block.1} parent=39 // pred_fallthru
          _
      $region40: #{unet_conv_block.1} parent=5 // pred_fallthru
        _
      %p244 = scmp.le.s32.totalorder 1, %s14
      %p245 = scmp.lt.s32.totalorder %s14, 3
      %p246 = pnand %p244, %p245
      %p247 = pneg %p246
      // Predicated region
      $region45: #{unet_conv_block.1} parent=5 // pred_check
        _
      $region46: #{unet_conv_block.1} parent=5 // pred_check_branch
        %249 = sbr.rel (%p246) target = $region48
      $region47: #{unet_conv_block.1} parent=5 // pred_region
        %s250 = ssub.s32 %s14, 1
        // Predicated region
        $region49: #{unet_conv_block.1} parent=47 // pred_check
          %p251 = pneg %p166
        $region50: #{unet_conv_block.1} parent=47 // pred_check_branch
          %253 = sbr.rel (%p251) target = $region52
        $region51: #{unet_conv_block.1} parent=47 // pred_region
          %255 = dma.done [#allocation6], 16
        $region52: #{unet_conv_block.1} parent=47 // pred_fallthru
          _
        %256 = sfence
        %p257 = scmp.lt.s32.totalorder %s19, 1
        %s258 = scalar_select %p257, %s19, 1
        %s259 = smul.addr %s258, 5
        %s260 = smul.addr %s259, 2
        %s261 = scalar_lea.vmem %s0, %s260
        %p262 = pneg %p40
        %p263 = pneg %p37
        %p264 = pneg %p61
        %p265 = pneg %p58
        %p266 = pneg %p82
        %p267 = pneg %p79
        %p268 = pneg %p103
        %p269 = pneg %p100
        %p270 = pneg %p124
        %p271 = pneg %p121
        %p272 = pneg %p145
        %p273 = pneg %p142
        %p274 = pneg %p166
        %p275 = pneg %p163
        %p276 = pneg %p192
        %p277 = pneg %p189
        %p278 = scmp.lt.s32.totalorder %s19, 1
        %s279 = scalar_select %p278, %s19, 1
        %s280 = smul.addr %s279, 3
        %s281 = smul.addr %s280, 8
        %s282 = scalar_lea.vmem %s7, %s281
        %p283 = scmp.lt.s32.totalorder %s19, 1
        %s284 = scalar_select %p283, %s19, 1
        %s285 = smul.addr %s284, 5
        %s286 = smul.addr %s285, 2
        %s287 = scalar_lea.vmem %s0, %s286
        %p288 = scmp.lt.s32.totalorder %s19, 1
        %s289 = scalar_select %p288, %s19, 1
        %s290 = smul.addr %s289, 3
        %s291 = smul.addr %s290, 8
        %s292 = scalar_lea.vmem %s7, %s291
        %v294 = vld [vmem:[%s5] sm:$0x7]
        %v295 = vld [vmem:[%s287] sm:$0xff]
        %v296 = vld [vmem:[%s287 + $0x8] sm:$0x3]
        %298 = vst [vmem:[#allocation1] ss:$2 sm:$0xff] %v295
        %v299 = vld.sshfl [vmem:[#allocation1] sm:$0xff pattern:$0x75643120]
        %v301 = vld.sshfl [vmem:[#allocation1 + $0x8] sm:$0xff pattern:$0x75643120]
        %303 = vrot.lane.b32.xlu0 %v299, 19
        %v304 = vpop.permute.xlu0 %303
        %305 = vrot.lane.b32.xlu0 %v301, 19
        %v306 = vpop.permute.xlu0 %305
        %v307 = vrot.slane %v304, 4
        %v308 = vrot.slane %v306, 4
        %vm309 = vcmask 1043456
        %v310 = vsel %vm309, %v307, %v308
        %vm311 = vcmask 154624
        %v312 = vsel %vm311, %v304, %v310
        %v313 = vsel %vm311, %v306, %v308
        %316 = vst [vmem:[#allocation2] sm:$0x33] %v312
        %317 = vst [vmem:[#allocation2 + $0x8] sm:$0x3] %v313
        %s318 = scalar_lea.vmem [#allocation1], 1
        %319 = vst [vmem:[%s318] ss:$2 sm:$0xff] %v295
        %v320 = vld.sshfl [vmem:[#allocation1] sm:$0xff pattern:$0x75643120]
        %v322 = vld.sshfl [vmem:[#allocation1 + $0x8] sm:$0xff pattern:$0x75643120]
        %324 = vrot.lane.b32.xlu0 %v320, 18
        %v325 = vpop.permute.xlu0 %324
        %326 = vrot.lane.b32.xlu0 %v322, 18
        %v327 = vpop.permute.xlu0 %326
        %v328 = vrot.slane %v325, 4
        %v329 = vrot.slane %v327, 4
        %v330 = vsel %vm309, %v328, %v329
        %vm331 = vcmask 146432
        %v332 = vsel %vm331, %v325, %v330
        %v333 = vsel %vm331, %v327, %v329
        %336 = vst [vmem:[#allocation2] sm:$0xcc] %v332
        %337 = vst [vmem:[#allocation2 + $0x8] sm:$0xc] %v333
        %338 = vst [vmem:[#allocation1] ss:$2 sm:$0xff] %v295
        %v339 = vld.sshfl [vmem:[#allocation1] sm:$0xff pattern:$0x75643120]
        %v341 = vld.sshfl [vmem:[#allocation1 + $0x8] sm:$0xff pattern:$0x75643120]
        %343 = vrot.lane.b32.xlu0 %v339, 17
        %v344 = vpop.permute.xlu0 %343
        %345 = vrot.lane.b32.xlu0 %v341, 17
        %v346 = vpop.permute.xlu0 %345
        %v347 = vrot.slane %v344, 4
        %v348 = vrot.slane %v346, 4
        %v349 = vsel %vm309, %v347, %v348
        %vm350 = vcmask 138240
        %v351 = vsel %vm350, %v344, %v349
        %v352 = vsel %vm350, %v346, %v348
        %355 = vst [vmem:[#allocation2 + $0xc] sm:$0x33] %v351
        %356 = vst [vmem:[#allocation2 + $0x14] sm:$0x3] %v352
        %s357 = scalar_lea.vmem [#allocation1], 1
        %358 = vst [vmem:[%s357] ss:$2 sm:$0xff] %v295
        %v359 = vld.sshfl [vmem:[#allocation1] sm:$0xff pattern:$0x75643120]
        %v361 = vld.sshfl [vmem:[#allocation1 + $0x8] sm:$0xff pattern:$0x75643120]
        %363 = vrot.lane.b32.xlu0 %v359, 1
        %v364 = vpop.permute.xlu0 %363
        %365 = vrot.lane.b32.xlu0 %v361, 1
        %v366 = vpop.permute.xlu0 %365
        %v367 = vrot.slane %v364, 4
        %v368 = vrot.slane %v366, 4
        %v369 = vsel %vm309, %v367, %v368
        %vm370 = vcmask 7168
        %v371 = vsel %vm370, %v364, %v369
        %v372 = vsel %vm370, %v366, %v368
        %375 = vst [vmem:[#allocation2 + $0xc] sm:$0xcc] %v371
        %376 = vst [vmem:[#allocation2 + $0x14] sm:$0xc] %v372
        %377 = vst [vmem:[#allocation1] ss:$2 sm:$0xff] %v295
        %v378 = vld.sshfl [vmem:[#allocation1] sm:$0xff pattern:$0x75643120]
        %v380 = vld.sshfl [vmem:[#allocation1 + $0x8] sm:$0xff pattern:$0x75643120]
        %v382 = vrot.slane %v378, 4
        %v383 = vrot.slane %v380, 4
        %v384 = vsel %vm309, %v382, %v383
        %387 = vst [vmem:[#allocation2 + $0x18] sm:$0x33] %v384
        %388 = vst [vmem:[#allocation2 + $0x20] sm:$0x3] %v383
        %s389 = scalar_lea.vmem [#allocation1], 1
        %390 = vst [vmem:[%s389] ss:$2 sm:$0xff] %v295
        %s392 = scalar_lea.vmem [#allocation1], 17
        %393 = vst [vmem:[%s392] ss:$2 sm:$0xff] %v296
        %v394 = vld.sshfl [vmem:[#allocation1] sm:$0xff pattern:$0x75643120]
        %v396 = vld.sshfl [vmem:[#allocation1 + $0x8] sm:$0xff pattern:$0x75643120]
        %v398 = vld.sshfl [vmem:[#allocation1 + $0x10] sm:$0xff pattern:$0x75643120]
        %400 = vrot.lane.b32.xlu0 %v394, 127
        %v401 = vpop.permute.xlu0 %400
        %402 = vrot.lane.b32.xlu0 %v396, 127
        %v403 = vpop.permute.xlu0 %402
        %404 = vrot.lane.b32.xlu0 %v398, 127
        %v405 = vpop.permute.xlu0 %404
        %v406 = vrot.slane %v401, 4
        %v407 = vrot.slane %v403, 4
        %v408 = vsel %vm309, %v406, %v407
        %vm409 = vcmask 1039360
        %v410 = vsel %vm409, %v408, %v403
        %v411 = vsel %vm409, %v407, %v405
        %414 = vst [vmem:[#allocation2 + $0x18] sm:$0xcc] %v410
        %415 = vst [vmem:[#allocation2 + $0x20] sm:$0xc] %v411
        %416 = vst [vmem:[#allocation1] ss:$2 sm:$0xff] %v295
        %s417 = scalar_lea.vmem [#allocation1], 16
        %418 = vst [vmem:[%s417] ss:$2 sm:$0xff] %v296
        %v419 = vld.sshfl [vmem:[#allocation1] sm:$0xff pattern:$0x75643120]
        %v421 = vld.sshfl [vmem:[#allocation1 + $0x8] sm:$0xff pattern:$0x75643120]
        %v423 = vld.sshfl [vmem:[#allocation1 + $0x10] sm:$0xff pattern:$0x75643120]
        %425 = vrot.lane.b32.xlu0 %v419, 111
        %v426 = vpop.permute.xlu0 %425
        %427 = vrot.lane.b32.xlu0 %v421, 111
        %v428 = vpop.permute.xlu0 %427
        %429 = vrot.lane.b32.xlu0 %v423, 111
        %v430 = vpop.permute.xlu0 %429
        %v431 = vrot.slane %v426, 4
        %v432 = vrot.slane %v428, 4
        %v433 = vsel %vm309, %v431, %v432
        %vm434 = vcmask 908288
        %v435 = vsel %vm434, %v433, %v428
        %v436 = vsel %vm434, %v432, %v430
        %439 = vst [vmem:[#allocation2 + $0x24] sm:$0x33] %v435
        %440 = vst [vmem:[#allocation2 + $0x2c] sm:$0x3] %v436
        %s441 = scalar_lea.vmem [#allocation1], 1
        %442 = vst [vmem:[%s441] ss:$2 sm:$0xff] %v295
        %s443 = scalar_lea.vmem [#allocation1], 17
        %444 = vst [vmem:[%s443] ss:$2 sm:$0xff] %v296
        %v445 = vld.sshfl [vmem:[#allocation1] sm:$0xff pattern:$0x75643120]
        %v447 = vld.sshfl [vmem:[#allocation1 + $0x8] sm:$0xff pattern:$0x75643120]
        %v449 = vld.sshfl [vmem:[#allocation1 + $0x10] sm:$0xff pattern:$0x75643120]
        %451 = vrot.lane.b32.xlu0 %v445, 110
        %v452 = vpop.permute.xlu0 %451
        %453 = vrot.lane.b32.xlu0 %v447, 110
        %v454 = vpop.permute.xlu0 %453
        %455 = vrot.lane.b32.xlu0 %v449, 110
        %v456 = vpop.permute.xlu0 %455
        %v457 = vrot.slane %v452, 4
        %v458 = vrot.slane %v454, 4
        %v459 = vsel %vm309, %v457, %v458
        %vm460 = vcmask 900096
        %v461 = vsel %vm460, %v459, %v454
        %v462 = vsel %vm460, %v458, %v456
        %465 = vst [vmem:[#allocation2 + $0x24] sm:$0xcc] %v461
        %466 = vst [vmem:[#allocation2 + $0x2c] sm:$0xc] %v462
        %467 = vst [vmem:[#allocation1] ss:$2 sm:$0xff] %v295
        %s468 = scalar_lea.vmem [#allocation1], 16
        %469 = vst [vmem:[%s468] ss:$2 sm:$0xff] %v296
        %v470 = vld.sshfl [vmem:[#allocation1] sm:$0xff pattern:$0x75643120]
        %v472 = vld.sshfl [vmem:[#allocation1 + $0x8] sm:$0xff pattern:$0x75643120]
        %v474 = vld.sshfl [vmem:[#allocation1 + $0x10] sm:$0xff pattern:$0x75643120]
        %476 = vrot.lane.b32.xlu0 %v470, 109
        %v477 = vpop.permute.xlu0 %476
        %478 = vrot.lane.b32.xlu0 %v472, 109
        %v479 = vpop.permute.xlu0 %478
        %480 = vrot.lane.b32.xlu0 %v474, 109
        %v481 = vpop.permute.xlu0 %480
        %v482 = vrot.slane %v477, 4
        %v483 = vrot.slane %v479, 4
        %v484 = vsel %vm309, %v482, %v483
        %vm485 = vcmask 891904
        %v486 = vsel %vm485, %v484, %v479
        %v487 = vsel %vm485, %v483, %v481
        %490 = vst [vmem:[#allocation2 + $0x30] sm:$0x33] %v486
        %491 = vst [vmem:[#allocation2 + $0x38] sm:$0x3] %v487
        %v492 = vld [vmem:[%s1] sm:$0xf]
        %v493 = vld [vmem:[#allocation2] sm:$0xff]
        %v494 = vld [vmem:[#allocation2 + $0x8] sm:$0xf]
        %v495 = vld [vmem:[#allocation2 + $0xc] sm:$0xff]
        %v496 = vld [vmem:[#allocation2 + $0x14] sm:$0xf]
        %v497 = vld [vmem:[#allocation2 + $0x18] sm:$0xff]
        %v498 = vld [vmem:[#allocation2 + $0x20] sm:$0xf]
        %v499 = vld [vmem:[#allocation2 + $0x24] sm:$0xff]
        %v500 = vld [vmem:[#allocation2 + $0x2c] sm:$0xf]
        %v501 = vld [vmem:[#allocation2 + $0x30] sm:$0x33]
        %v502 = vld [vmem:[#allocation2 + $0x38] sm:$0x3]
        %v513 = vunpack.c.l.b16 %v493
        %v514 = vunpack.c.h.b16 %v493
        %v515 = vunpack.c.l.b16 %v494
        %v516 = vunpack.c.l.b16 %v495
        %v517 = vunpack.c.h.b16 %v495
        %v518 = vunpack.c.l.b16 %v496
        %v519 = vunpack.c.l.b16 %v497
        %v520 = vunpack.c.h.b16 %v497
        %v521 = vunpack.c.l.b16 %v498
        %v522 = vunpack.c.l.b16 %v499
        %v523 = vunpack.c.h.b16 %v499
        %v524 = vunpack.c.l.b16 %v500
        %v525 = vunpack.c.l.b16 %v501
        %v526 = vunpack.c.h.b16 %v501
        %v527 = vunpack.c.l.b16 %v502
        %v528 = vpack.c.b16 %v516, %v513
        %v529 = vpack.c.b16 %v517, %v514
        %v530 = vpack.c.b16 %v518, %v515
        %v531 = vpack.c.b16 %v522, %v519
        %v532 = vpack.c.b16 %v523, %v520
        %v533 = vpack.c.b16 %v524, %v521
        %v534 = vpack.c.b16 %v525, %v525
        %v535 = vpack.c.b16 %v526, %v526
        %v536 = vpack.c.b16 %v527, %v527
        %vm543 = vcmask 293888
        %v545 = vsel %vm543, %v492, 0
        %vm547 = vcmask 1041408
        %v549 = vsel %vm547, %v534, 0
        %v552 = vsel %vm547, %v535, 0
        %v555 = vsel %vm547, %v536, 0
        %557 = vmatpush.bf16.msra.mxu0 0
        %558 = vmatpush.bf16.msra.mxu0 0
        %559 = vmatpush.bf16.msra.mxu0 0
        %560 = vmatpush.bf16.msra.mxu0 0
        %561 = vmatpush.bf16.msra.mxu0 0
        %562 = vmatpush.bf16.msra.mxu0 %v549
        %563 = vmatpush.bf16.msra.mxu0 %v531
        %564 = vmatpush.bf16.msra.mxu0 %v528
        %565 = vmatmul.bf16.gmra.mxu0 %v545
        %v566 = vpop.f32.mrf.mxu0
        %v567 = vadd.f32 0.0, %v566
        %v568 = vpop.f32.mrf.mxu0
        %569 = vdwg.mxu0
        %570 = vmatpush.bf16.msra.mxu0 0
        %571 = vmatpush.bf16.msra.mxu0 0
        %572 = vmatpush.bf16.msra.mxu0 0
        %573 = vmatpush.bf16.msra.mxu0 0
        %574 = vmatpush.bf16.msra.mxu0 0
        %575 = vmatpush.bf16.msra.mxu0 %v552
        %576 = vmatpush.bf16.msra.mxu0 %v532
        %577 = vmatpush.bf16.msra.mxu0 %v529
        %578 = vmatmul.bf16.gmra.mxu0 %v545
        %v579 = vpop.f32.mrf.mxu0
        %v580 = vadd.f32 0.0, %v579
        %v581 = vpop.f32.mrf.mxu0
        %582 = vdwg.mxu0
        %583 = vmatpush.bf16.msra.mxu0 0
        %584 = vmatpush.bf16.msra.mxu0 0
        %585 = vmatpush.bf16.msra.mxu0 0
        %586 = vmatpush.bf16.msra.mxu0 0
        %587 = vmatpush.bf16.msra.mxu0 0
        %588 = vmatpush.bf16.msra.mxu0 %v555
        %589 = vmatpush.bf16.msra.mxu0 %v533
        %590 = vmatpush.bf16.msra.mxu0 %v530
        %591 = vmatmul.bf16.gmra.mxu0 %v545
        %v592 = vpop.f32.mrf.mxu0
        %v593 = vadd.f32 0.0, %v592
        %v594 = vpop.f32.mrf.mxu0
        %595 = vdwg.mxu0
        %s596 = sld [smem:[#allocation5]]
        %v598 = vperm.slane %v294, 0
        %v599 = vperm.slane %v294, 1
        %v600 = vperm.slane %v294, 2
        %v604 = vmul.f32 %v567, %v598
        %v605 = vmul.f32 %v580, %v599
        %v606 = vmul.f32 %v593, %v600
        %v607 = vmul.f32 %v604, %v604
        %v608 = vmul.f32 %v605, %v605
        %v609 = vmul.f32 %v606, %v606
        %v610 = vadd.f32 %v607, %v608
        %v611 = vadd.f32 %v610, %v609
        %612 = vadd.xlane.f32.xlu0 %v611
        %v613 = vpop.xlane.xlu0 %612
        %v614 = vmul.f32 %v613, 0.00390625
        %s615 = sand.u32 2147483647, %s596
        %v616 = vstv %s615
        %v617 = vadd.f32 %v614, %v616
        %v618 = vrsqrt.pop %v617
        %v619 = vmul.f32 %v618, %v617
        %v620 = vmul.f32 %v619, %v618
        %v621 = vmul.f32 0.5, %v620
        %v622 = vsub.f32 1.5, %v621
        %v623 = vmul.f32 %v618, %v622
        %vm624 = vweird.f32 %v617
        %vm625 = vweird.f32 %v618
        %vm626 = vmor %vm624, %vm625
        %v627 = vsel %vm626, %v618, %v623
        %v628 = vmul.f32 %v604, %v627
        %v629 = vmul.f32 %v605, %v627
        %v630 = vmul.f32 %v606, %v627
        %v631 = vld [vmem:[%s3] sm:$0xff]
        %633 = vset.pattern.permute.xlu0 0
        %634 = vperm.xlu0 %633, %v631
        %v635 = vpop.permute.xlu0 %634
        %v637 = vmul.f32 %v635, %v628
        %v638 = vmul.f32 %v635, %v629
        %v639 = vmul.f32 %v635, %v630
        %s640 = scalar_lea.vmem %s3, 8
        %v641 = vld [vmem:[%s640] sm:$0xff]
        %643 = vset.pattern.permute.xlu0 0
        %644 = vperm.xlu0 %643, %v641
        %v645 = vpop.permute.xlu0 %644
        %v647 = vadd.f32 %v637, %v645
        %v648 = vadd.f32 %v638, %v645
        %v649 = vadd.f32 %v639, %v645
        %s650 = scalar_lea.vmem %s3, 16
        %v651 = vld [vmem:[%s650] sm:$0xff]
        %653 = vset.pattern.permute.xlu0 0
        %654 = vperm.xlu0 %653, %v651
        %v655 = vpop.permute.xlu0 %654
        %v657 = vmax.f32 %v647, %v655
        %v658 = vmax.f32 %v648, %v655
        %v659 = vmax.f32 %v649, %v655
        %v660 = vmax.f32 %v657, 0.0
        %v661 = vmax.f32 %v658, 0.0
        %v662 = vmax.f32 %v659, 0.0
        %v663 = vmul.f32 %v660, %v598
        %v664 = vmul.f32 %v661, %v599
        %v665 = vmul.f32 %v662, %v600
        %666 = vst [vmem:[#allocation4] sm:$0xf] 0
        %667 = vst [vmem:[#allocation4 + $0x10] sm:$0xf] 0
        %v668 = vpack.c.bf16 %v664, %v663
        %v669 = vpack.c.bf16 %v665, %v665
        %670 = vst [vmem:[#allocation4 + $0x4] sm:$0xff] %v668
        %671 = vst [vmem:[#allocation4 + $0xc] sm:$0xf] %v669
        %v672 = vld [vmem:[#allocation4] sm:$0xff]
        %v673 = vld [vmem:[#allocation4 + $0x8] sm:$0xff]
        %v674 = vld [vmem:[#allocation4 + $0x10] sm:$0xf]
        %677 = vrot.lane.b32.xlu0 %v672, 19
        %v678 = vpop.permute.xlu0 %677
        %679 = vrot.lane.b32.xlu0 %v673, 19
        %v680 = vpop.permute.xlu0 %679
        %v681 = vrot.slane %v678, 4
        %v682 = vrot.slane %v680, 4
        %v683 = vsel %vm309, %v681, %v682
        %v684 = vsel %vm311, %v678, %v683
        %v685 = vsel %vm311, %v680, %v682
        %688 = vst [vmem:[#allocation3] sm:$0xff] %v684
        %689 = vst [vmem:[#allocation3 + $0x8] sm:$0xf] %v685
        %690 = vrot.lane.b32.xlu0 %v672, 18
        %v691 = vpop.permute.xlu0 %690
        %692 = vrot.lane.b32.xlu0 %v673, 18
        %v693 = vpop.permute.xlu0 %692
        %v694 = vrot.slane %v691, 4
        %v695 = vrot.slane %v693, 4
        %v696 = vsel %vm309, %v694, %v695
        %v697 = vsel %vm331, %v691, %v696
        %v698 = vsel %vm331, %v693, %v695
        %701 = vst [vmem:[#allocation3 + $0xc] sm:$0xff] %v697
        %702 = vst [vmem:[#allocation3 + $0x14] sm:$0xf] %v698
        %703 = vrot.lane.b32.xlu0 %v672, 17
        %v704 = vpop.permute.xlu0 %703
        %705 = vrot.lane.b32.xlu0 %v673, 17
        %v706 = vpop.permute.xlu0 %705
        %v707 = vrot.slane %v704, 4
        %v708 = vrot.slane %v706, 4
        %v709 = vsel %vm309, %v707, %v708
        %v710 = vsel %vm350, %v704, %v709
        %v711 = vsel %vm350, %v706, %v708
        %714 = vst [vmem:[#allocation3 + $0x18] sm:$0xff] %v710
        %715 = vst [vmem:[#allocation3 + $0x20] sm:$0xf] %v711
        %716 = vrot.lane.b32.xlu0 %v672, 1
        %v717 = vpop.permute.xlu0 %716
        %718 = vrot.lane.b32.xlu0 %v673, 1
        %v719 = vpop.permute.xlu0 %718
        %v720 = vrot.slane %v717, 4
        %v721 = vrot.slane %v719, 4
        %v722 = vsel %vm309, %v720, %v721
        %v723 = vsel %vm370, %v717, %v722
        %v724 = vsel %vm370, %v719, %v721
        %727 = vst [vmem:[#allocation3 + $0x24] sm:$0xff] %v723
        %728 = vst [vmem:[#allocation3 + $0x2c] sm:$0xf] %v724
        %v729 = vrot.slane %v672, 4
        %v730 = vrot.slane %v673, 4
        %v731 = vsel %vm309, %v729, %v730
        %734 = vst [vmem:[#allocation3 + $0x30] sm:$0xff] %v731
        %735 = vst [vmem:[#allocation3 + $0x38] sm:$0xf] %v730
        %737 = vrot.lane.b32.xlu0 %v672, 127
        %v738 = vpop.permute.xlu0 %737
        %739 = vrot.lane.b32.xlu0 %v673, 127
        %v740 = vpop.permute.xlu0 %739
        %741 = vrot.lane.b32.xlu0 %v674, 127
        %v742 = vpop.permute.xlu0 %741
        %v743 = vrot.slane %v738, 4
        %v744 = vrot.slane %v740, 4
        %v745 = vsel %vm309, %v743, %v744
        %v746 = vsel %vm409, %v745, %v740
        %v747 = vsel %vm409, %v744, %v742
        %750 = vst [vmem:[#allocation3 + $0x3c] sm:$0xff] %v746
        %751 = vst [vmem:[#allocation3 + $0x44] sm:$0xf] %v747
        %752 = vrot.lane.b32.xlu0 %v672, 111
        %v753 = vpop.permute.xlu0 %752
        %754 = vrot.lane.b32.xlu0 %v673, 111
        %v755 = vpop.permute.xlu0 %754
        %756 = vrot.lane.b32.xlu0 %v674, 111
        %v757 = vpop.permute.xlu0 %756
        %v758 = vrot.slane %v753, 4
        %v759 = vrot.slane %v755, 4
        %v760 = vsel %vm309, %v758, %v759
        %v761 = vsel %vm434, %v760, %v755
        %v762 = vsel %vm434, %v759, %v757
        %765 = vst [vmem:[#allocation3 + $0x48] sm:$0xff] %v761
        %766 = vst [vmem:[#allocation3 + $0x50] sm:$0xf] %v762
        %767 = vrot.lane.b32.xlu0 %v672, 110
        %v768 = vpop.permute.xlu0 %767
        %769 = vrot.lane.b32.xlu0 %v673, 110
        %v770 = vpop.permute.xlu0 %769
        %771 = vrot.lane.b32.xlu0 %v674, 110
        %v772 = vpop.permute.xlu0 %771
        %v773 = vrot.slane %v768, 4
        %v774 = vrot.slane %v770, 4
        %v775 = vsel %vm309, %v773, %v774
        %v776 = vsel %vm460, %v775, %v770
        %v777 = vsel %vm460, %v774, %v772
        %780 = vst [vmem:[#allocation3 + $0x54] sm:$0xff] %v776
        %781 = vst [vmem:[#allocation3 + $0x5c] sm:$0xf] %v777
        %782 = vrot.lane.b32.xlu0 %v672, 109
        %v783 = vpop.permute.xlu0 %782
        %784 = vrot.lane.b32.xlu0 %v673, 109
        %v785 = vpop.permute.xlu0 %784
        %786 = vrot.lane.b32.xlu0 %v674, 109
        %v787 = vpop.permute.xlu0 %786
        %v788 = vrot.slane %v783, 4
        %v789 = vrot.slane %v785, 4
        %v790 = vsel %vm309, %v788, %v789
        %v791 = vsel %vm485, %v790, %v785
        %v792 = vsel %vm485, %v789, %v787
        %795 = vst [vmem:[#allocation3 + $0x60] sm:$0xff] %v791
        %796 = vst [vmem:[#allocation3 + $0x68] sm:$0xf] %v792
        %v797 = vld [vmem:[%s2] sm:$0xf]
        %v798 = vld [vmem:[#allocation3] sm:$0xff]
        %v799 = vld [vmem:[#allocation3 + $0x8] sm:$0xf]
        %v800 = vld [vmem:[#allocation3 + $0xc] sm:$0xff]
        %v801 = vld [vmem:[#allocation3 + $0x14] sm:$0xf]
        %v802 = vld [vmem:[#allocation3 + $0x18] sm:$0xff]
        %v803 = vld [vmem:[#allocation3 + $0x20] sm:$0xf]
        %v804 = vld [vmem:[#allocation3 + $0x24] sm:$0xff]
        %v805 = vld [vmem:[#allocation3 + $0x2c] sm:$0xf]
        %v806 = vld [vmem:[#allocation3 + $0x30] sm:$0xff]
        %v807 = vld [vmem:[#allocation3 + $0x38] sm:$0xf]
        %v808 = vld [vmem:[#allocation3 + $0x3c] sm:$0xff]
        %v809 = vld [vmem:[#allocation3 + $0x44] sm:$0xf]
        %v810 = vld [vmem:[#allocation3 + $0x48] sm:$0xff]
        %v811 = vld [vmem:[#allocation3 + $0x50] sm:$0xf]
        %v812 = vld [vmem:[#allocation3 + $0x54] sm:$0xff]
        %v813 = vld [vmem:[#allocation3 + $0x5c] sm:$0xf]
        %v814 = vld [vmem:[#allocation3 + $0x60] sm:$0xff]
        %v815 = vld [vmem:[#allocation3 + $0x68] sm:$0xf]
        %v834 = vunpack.c.l.b16 %v798
        %v835 = vunpack.c.h.b16 %v798
        %v836 = vunpack.c.l.b16 %v799
        %v837 = vunpack.c.l.b16 %v800
        %v838 = vunpack.c.h.b16 %v800
        %v839 = vunpack.c.l.b16 %v801
        %v840 = vunpack.c.l.b16 %v802
        %v841 = vunpack.c.h.b16 %v802
        %v842 = vunpack.c.l.b16 %v803
        %v843 = vunpack.c.l.b16 %v804
        %v844 = vunpack.c.h.b16 %v804
        %v845 = vunpack.c.l.b16 %v805
        %v846 = vunpack.c.l.b16 %v806
        %v847 = vunpack.c.h.b16 %v806
        %v848 = vunpack.c.l.b16 %v807
        %v849 = vunpack.c.l.b16 %v808
        %v850 = vunpack.c.h.b16 %v808
        %v851 = vunpack.c.l.b16 %v809
        %v852 = vunpack.c.l.b16 %v810
        %v853 = vunpack.c.h.b16 %v810
        %v854 = vunpack.c.l.b16 %v811
        %v855 = vunpack.c.l.b16 %v812
        %v856 = vunpack.c.h.b16 %v812
        %v857 = vunpack.c.l.b16 %v813
        %v858 = vunpack.c.l.b16 %v814
        %v859 = vunpack.c.h.b16 %v814
        %v860 = vunpack.c.l.b16 %v815
        %v861 = vpack.c.b16 %v837, %v834
        %v862 = vpack.c.b16 %v838, %v835
        %v863 = vpack.c.b16 %v839, %v836
        %v864 = vpack.c.b16 %v843, %v840
        %v865 = vpack.c.b16 %v844, %v841
        %v866 = vpack.c.b16 %v845, %v842
        %v867 = vpack.c.b16 %v849, %v846
        %v868 = vpack.c.b16 %v850, %v847
        %v869 = vpack.c.b16 %v851, %v848
        %v870 = vpack.c.b16 %v855, %v852
        %v871 = vpack.c.b16 %v856, %v853
        %v872 = vpack.c.b16 %v857, %v854
        %v873 = vpack.c.b16 %v858, %v858
        %v874 = vpack.c.b16 %v859, %v859
        %v875 = vpack.c.b16 %v860, %v860
        %vm888 = vcmask 588800
        %v890 = vsel %vm888, %v797, 0
        %vm892 = vcmask 1043456
        %v894 = vsel %vm892, %v873, 0
        %v897 = vsel %vm892, %v874, 0
        %v900 = vsel %vm892, %v875, 0
        %902 = vmatpush.bf16.msra.mxu0 0
        %903 = vmatpush.bf16.msra.mxu0 0
        %904 = vmatpush.bf16.msra.mxu0 0
        %905 = vmatpush.bf16.msra.mxu0 %v894
        %906 = vmatpush.bf16.msra.mxu0 %v870
        %907 = vmatpush.bf16.msra.mxu0 %v867
        %908 = vmatpush.bf16.msra.mxu0 %v864
        %909 = vmatpush.bf16.msra.mxu0 %v861
        %910 = vmatmul.bf16.gmra.mxu0 %v890
        %v911 = vpop.f32.mrf.mxu0
        %v912 = vadd.f32 0.0, %v911
        %v913 = vpop.f32.mrf.mxu0
        %914 = vdwg.mxu0
        %915 = vmatpush.bf16.msra.mxu0 0
        %916 = vmatpush.bf16.msra.mxu0 0
        %917 = vmatpush.bf16.msra.mxu0 0
        %918 = vmatpush.bf16.msra.mxu0 %v897
        %919 = vmatpush.bf16.msra.mxu0 %v871
        %920 = vmatpush.bf16.msra.mxu0 %v868
        %921 = vmatpush.bf16.msra.mxu0 %v865
        %922 = vmatpush.bf16.msra.mxu0 %v862
        %923 = vmatmul.bf16.gmra.mxu0 %v890
        %v924 = vpop.f32.mrf.mxu0
        %v925 = vadd.f32 0.0, %v924
        %v926 = vpop.f32.mrf.mxu0
        %927 = vdwg.mxu0
        %928 = vmatpush.bf16.msra.mxu0 0
        %929 = vmatpush.bf16.msra.mxu0 0
        %930 = vmatpush.bf16.msra.mxu0 0
        %931 = vmatpush.bf16.msra.mxu0 %v900
        %932 = vmatpush.bf16.msra.mxu0 %v872
        %933 = vmatpush.bf16.msra.mxu0 %v869
        %934 = vmatpush.bf16.msra.mxu0 %v866
        %935 = vmatpush.bf16.msra.mxu0 %v863
        %936 = vmatmul.bf16.gmra.mxu0 %v890
        %v937 = vpop.f32.mrf.mxu0
        %v938 = vadd.f32 0.0, %v937
        %v939 = vpop.f32.mrf.mxu0
        %940 = vdwg.mxu0
        %s941 = sld [smem:[#allocation5 + $0x1]]
        %v942 = vmul.f32 %v912, %v598
        %v943 = vmul.f32 %v925, %v599
        %v944 = vmul.f32 %v938, %v600
        %v945 = vmul.f32 %v942, %v942
        %v946 = vmul.f32 %v943, %v943
        %v947 = vmul.f32 %v944, %v944
        %v948 = vadd.f32 %v945, %v946
        %v949 = vadd.f32 %v948, %v947
        %950 = vadd.xlane.f32.xlu0 %v949
        %v951 = vpop.xlane.xlu0 %950
        %v952 = vmul.f32 %v951, 0.00390625
        %s953 = sand.u32 2147483647, %s941
        %v954 = vstv %s953
        %v955 = vadd.f32 %v952, %v954
        %v956 = vrsqrt.pop %v955
        %v957 = vmul.f32 %v956, %v955
        %v958 = vmul.f32 %v957, %v956
        %v959 = vmul.f32 0.5, %v958
        %v960 = vsub.f32 1.5, %v959
        %v961 = vmul.f32 %v956, %v960
        %vm962 = vweird.f32 %v955
        %vm963 = vweird.f32 %v956
        %vm964 = vmor %vm962, %vm963
        %v965 = vsel %vm964, %v956, %v961
        %v966 = vmul.f32 %v942, %v965
        %v967 = vmul.f32 %v943, %v965
        %v968 = vmul.f32 %v944, %v965
        %v969 = vld [vmem:[%s4] sm:$0xff]
        %971 = vset.pattern.permute.xlu0 0
        %972 = vperm.xlu0 %971, %v969
        %v973 = vpop.permute.xlu0 %972
        %v975 = vmul.f32 %v973, %v966
        %v976 = vmul.f32 %v973, %v967
        %v977 = vmul.f32 %v973, %v968
        %s978 = scalar_lea.vmem %s4, 8
        %v979 = vld [vmem:[%s978] sm:$0xff]
        %981 = vset.pattern.permute.xlu0 0
        %982 = vperm.xlu0 %981, %v979
        %v983 = vpop.permute.xlu0 %982
        %v985 = vadd.f32 %v975, %v983
        %v986 = vadd.f32 %v976, %v983
        %v987 = vadd.f32 %v977, %v983
        %s988 = scalar_lea.vmem %s4, 16
        %v989 = vld [vmem:[%s988] sm:$0xff]
        %991 = vset.pattern.permute.xlu0 0
        %992 = vperm.xlu0 %991, %v989
        %v993 = vpop.permute.xlu0 %992
        %v995 = vmax.f32 %v985, %v993
        %v996 = vmax.f32 %v986, %v993
        %v997 = vmax.f32 %v987, %v993
        %v998 = vmax.f32 %v995, 0.0
        %v999 = vmax.f32 %v996, 0.0
        %v1000 = vmax.f32 %v997, 0.0
        %v1001 = vmul.f32 %v998, %v598
        %v1002 = vmul.f32 %v999, %v599
        %v1003 = vmul.f32 %v1000, %v600
        %1004 = vst [vmem:[%s292] sm:$0xff] %v1001
        %1005 = vst [vmem:[%s292 + $0x8] sm:$0xff] %v1002
        %1006 = vst [vmem:[%s292 + $0x10] sm:$0xff] %v1003
        %p1007 = scmp.lt.s32.totalorder %s19, 1
        %s1008 = scalar_select %p1007, %s19, 1
        %s1009 = smul.addr %s1008, 3
        %s1010 = smul.addr %s1009, 8
        %s1011 = scalar_lea.vmem %s7, %s1010
        // Predicated region
        $region53: #{unet_conv_block.1} parent=47 // pred_check
          %p1012 = pneg %p189
        $region54: #{unet_conv_block.1} parent=47 // pred_check_branch
          %1014 = sbr.rel (%p1012) target = $region56
        $region55: #{unet_conv_block.1} parent=47 // pred_region
          _
        $region56: #{unet_conv_block.1} parent=47 // pred_fallthru
          _
      $region48: #{unet_conv_block.1} parent=5 // pred_fallthru
        _
      %p1015 = scmp.le.s32.totalorder 2, %s14
      // Predicated region
      $region57: #{unet_conv_block.1} parent=5 // pred_check
        %p1016 = pneg %p1015
      $region58: #{unet_conv_block.1} parent=5 // pred_check_branch
        %1018 = sbr.rel (%p1016) target = $region60
      $region59: #{unet_conv_block.1} parent=5 // pred_region
        %s1019 = ssub.s32 %s14, 2
        // Predicated region
        $region61: #{unet_conv_block.1} parent=59 // pred_check
          %p1020 = pneg %p195
        $region62: #{unet_conv_block.1} parent=59 // pred_check_branch
          %1022 = sbr.rel (%p1020) target = $region64
        $region63: #{unet_conv_block.1} parent=59 // pred_region
          %p1023 = scmp.lt.s32.totalorder %s20, 1
          %s1024 = scalar_select %p1023, %s20, 1
          %s1025 = smul.addr %s1024, 3
          %s1026 = smul.addr %s1025, 8
          %s1027 = scalar_lea.vmem %s7, %s1026
        $region64: #{unet_conv_block.1} parent=59 // pred_fallthru
          _
      $region60: #{unet_conv_block.1} parent=5 // pred_fallthru
        _
    $region6: #{unet_conv_block.1} parent=1 // loop_footer
      %s18 = sadd.s32 1, %s14
    $region7: #{unet_conv_block.1} parent=1 // loop_footer_branch
      %13 = sbr.rel target = $region3
    $region8: #{unet_conv_block.1} parent=1 // loop_exit
      _
    %1028 = vsyncpa [#allocation6], 1
    %s1029 = scalar_lea.sflag [#allocation6], 1
    %1030 = vsyncpa %s1029, 1

</llo_original>
